<compile_context>
chip_gen: v5e
topology: v5e:2x2
jax: 0.10.0
libtpu: 0.0.40
codegen_flags: <defaults>
</compile_context>

<pallas_src>
import jax
import jax.numpy as jnp
from jax import lax
from jax.experimental import pallas as pl
from jax.experimental.pallas import tpu as pltpu


def _round_up(x, m):
    return (x + m - 1) // m * m


def _images_per_step(n, cap=8):
    """Images per grid step: prefer a grid of length 2 (both v7x TCs busy), fat steps."""
    if n < 2 or n % 2:
        return 1
    b = min(n // 2, cap)
    while n % b:
        b -= 1
    return max(b, 1)


# ------------------------------ fused kernel --------------------------------

def _make_kernel(H, W, Cin, Cseg, B, PW):
    """Fused kernel (closure over static shapes).

    Layout: per image the zero-padded picture is flattened to a single "flat" axis of
    length PW (= (H+2)*(W+2) + 1-element halo each end, rounded up to x128) that lives
    on the LANE axis; channels live on sublanes.  For a 3x3 tap (ky, kx) the input of
    output slab position p is flat index p + (ky*(W+2) + kx), so each tap is a static
    lane roll.  Slab outputs in the two halo columns / the padded tail are garbage and
    are masked (pool) or dropped (wrapper slice).
    """
    Wp = W + 2
    HWS = H * Wp                                  # slab positions (rows 1..H, all cols)
    taps = tuple(ky * Wp + kx for ky in range(3) for kx in range(3))
    inv_hw = 1.0 / float(H * W)

    def kernel(x_ref, msk_ref, wseg_ref, bseg_ref, wpx_ref, wps_ref, bpred_ref,
               wfc_ref, bfc_ref, seg_out_ref, logits_ref, px_ref, ps_ref):
        interior = msk_ref[...]                   # (1, PW) 1.0 on real output pixels
        wseg = wseg_ref[...]                      # (Cseg, 9*Cin)
        wpx = wpx_ref[...]                        # (Cp,   9*Cin)
        wps = wps_ref[...]                        # (Cp,   9*Cseg)
        bseg = bseg_ref[...]                      # (Cseg, 1)
        bpred = bpred_ref[...]                    # (Cp, 1)
        wfc = wfc_ref[...]                        # (Kc, Cp)
        bfc = bfc_ref[...]                        # (Kc, 1)

        for b in range(B):                        # static unroll, B is small
            xb = x_ref[b]                         # (Cin, PW) flat zero-padded image

            # ---- in-VMEM im2col of the image channels (rows ordered tap-major) ----
            for t, s in enumerate(taps):
                chunk = xb if s == 0 else pltpu.roll(xb, PW - s, axis=1)
                px_ref[t * Cin:(t + 1) * Cin, :] = chunk
            patches_x = px_ref[...]               # (9*Cin, PW)

            # ---- segment conv: ONE matmul, spatial on the lane axis ----
            seg = jnp.dot(wseg, patches_x,
                          preferred_element_type=jnp.float32) + bseg      # (Cseg, PW)
            seg_out_ref[b] = seg                  # garbage cols dropped by the wrapper
            seg_m = seg * interior                # zero halo columns / padded tail

            # zero-padded seg activation re-aligned to the same flat indexing as x
            se = pltpu.roll(seg_m, Wp + 1, axis=1)                         # (Cseg, PW)
            for t, s in enumerate(taps):
                chunk = se if s == 0 else pltpu.roll(se, PW - s, axis=1)
                ps_ref[t * Cseg:(t + 1) * Cseg, :] = chunk
            patches_s = ps_ref[...]               # (9*Cseg, PW)

            # ---- predict conv on concat([x, seg]) + ReLU ----
            h = (jnp.dot(wpx, patches_x, preferred_element_type=jnp.float32)
                 + jnp.dot(wps, patches_s, preferred_element_type=jnp.float32)
                 + bpred)
            h = jnp.maximum(h, 0.0)               # (Cp, PW)

            # ---- global average pool (masked lane reduction) + FC ----
            pooled = jnp.sum(h * interior, axis=1, keepdims=True) * inv_hw  # (Cp, 1)
            logits_ref[b] = jnp.dot(wfc, pooled,
                                    preferred_element_type=jnp.float32) + bfc

    return kernel


# ------------------------------ JAX wrapper ----------------------------------

def combined_model_forward(x_nchw, params):
    """Returns (seg_masks [N,Cseg,H,W], logits [N,num_classes]) like the torch module."""
    N, Cin, H, W = x_nchw.shape
    Cseg = params["w_seg"].shape[-1]
    Cp = params["w_pred"].shape[-1]
    Kc = params["w_fc"].shape[-1]
    Wp = W + 2
    P = (H + 2) * Wp
    HWS = H * Wp
    PW = _round_up(P + 2, 128)                    # flat axis padded to a lane multiple
    B = _images_per_step(N)
    G = N // B

    # NCHW kept as-is: pad spatially, flatten spatial, pad the flat axis to PW with a
    # 1-element leading halo.  Only pads + reshapes -> no XLA transpose round trip.
    x_pad = jnp.pad(x_nchw, ((0, 0), (0, 0), (1, 1), (1, 1)))
    x_ext = jnp.pad(x_pad.reshape(N, Cin, P), ((0, 0), (0, 0), (1, PW - P - 1)))

    # Interior-output mask over the flat slab (halo columns and padded tail are 0).
    pos = jnp.arange(PW, dtype=jnp.int32)
    col = pos % Wp
    interior = ((pos < HWS) & (col >= 1) & (col <= W)).astype(jnp.float32).reshape(1, PW)

    # Weights in "out-channels on sublanes, (tap, in-channel) on lanes" form (f32).
    w_seg_t = params["w_seg"].reshape(9 * Cin, Cseg).T              # (Cseg, 9*Cin)
    w_px_t = params["w_pred"][:, :Cin, :].reshape(9 * Cin, Cp).T    # (Cp, 9*Cin)
    w_ps_t = params["w_pred"][:, Cin:, :].reshape(9 * Cseg, Cp).T   # (Cp, 9*Cseg)
    b_seg = params["b_seg"].reshape(Cseg, 1)
    b_pred = params["b_pred"].reshape(Cp, 1)
    w_fc_t = params["w_fc"].T                                       # (Kc, Cp)
    b_fc = params["b_fc"].reshape(Kc, 1)

    kernel = _make_kernel(H, W, Cin, Cseg, B, PW)

    flops = 2 * N * HWS * 9 * (Cin * Cseg + Cin * Cp + Cseg * Cp) + 2 * N * Cp * (HWS + Kc)
    bytes_accessed = 4 * (x_ext.size + N * Cseg * PW + N * Kc + PW
                          + w_seg_t.size + w_px_t.size + w_ps_t.size + w_fc_t.size)

    grid_spec = pltpu.PrefetchScalarGridSpec(
        num_scalar_prefetch=0,
        grid=(G,),
        in_specs=[
            pl.BlockSpec((B, Cin, PW), lambda i: (i, 0, 0)),     # x_ext (B images/step)
            pl.BlockSpec((1, PW), lambda i: (0, 0)),             # interior mask row
            pl.BlockSpec((Cseg, 9 * Cin), lambda i: (0, 0)),     # w_seg
            pl.BlockSpec((Cseg, 1), lambda i: (0, 0)),           # b_seg
            pl.BlockSpec((Cp, 9 * Cin), lambda i: (0, 0)),       # w_pred (x channels)
            pl.BlockSpec((Cp, 9 * Cseg), lambda i: (0, 0)),      # w_pred (seg channels)
            pl.BlockSpec((Cp, 1), lambda i: (0, 0)),             # b_pred
            pl.BlockSpec((Kc, Cp), lambda i: (0, 0)),            # w_fc
            pl.BlockSpec((Kc, 1), lambda i: (0, 0)),             # b_fc
        ],
        out_specs=[
            pl.BlockSpec((B, Cseg, PW), lambda i: (i, 0, 0)),    # seg slab (lane-dense)
            pl.BlockSpec((B, Kc, 1), lambda i: (i, 0, 0)),       # logits (as columns)
        ],
        scratch_shapes=[pltpu.VMEM((9 * Cin, PW), jnp.float32),  # x im2col patches
                        pltpu.VMEM((9 * Cseg, PW), jnp.float32)],  # seg im2col patches
    )

    seg_slab, logits_col = pl.pallas_call(
        kernel,
        out_shape=(jax.ShapeDtypeStruct((N, Cseg, PW), jnp.float32),
                   jax.ShapeDtypeStruct((N, Kc, 1), jnp.float32)),
        grid_spec=grid_spec,
        compiler_params=pltpu.CompilerParams(
            dimension_semantics=("parallel",)),   # feeds both v7x TensorCores for G>=2
        cost_estimate=pl.CostEstimate(flops=int(flops), transcendentals=0,
                                      bytes_accessed=int(bytes_accessed)),
    )(x_ext, interior, w_seg_t, b_seg, w_px_t, w_ps_t, b_pred, w_fc_t, b_fc)

    # (N, Cseg, PW) -> keep H*(W+2) slab -> (N, Cseg, H, W+2) -> drop halo columns.
    seg_masks = seg_slab[:, :, :HWS].reshape(N, Cseg, H, Wp)[:, :, :, 1:W + 1]
    logits = logits_col.reshape(N, Kc)
    # seg_masks.detach() in torch is a forward no-op; the fused kernel reuses the values.
    # TODO(synk): for large H*W, tile the slab along the lane axis (v7x: budget against
    # the 32 MiB scoped-VMEM default; overlap tiles by W+2 columns for the conv halo).
    return seg_masks, logits


def init_params(key, cin=4, cseg=2, cp=8, num_classes=3, k=3):
    ks = jax.random.split(key, 5)
    # Conv weights stored as (k*k, Cin, Cout) with tap index t = ky*k + kx.
    # NOTE: to import real torch Conv2d weights (Cout, Cin, Kh, Kw), permute to
    # (Kh, Kw, Cin, Cout) and reshape to (k*k, Cin, Cout).
    w_seg = 0.1 * jax.random.normal(ks[0], (k * k, cin, cseg), jnp.float32)
    b_seg = 0.1 * jax.random.normal(ks[1], (1, cseg), jnp.float32)
    ccat = cin + cseg
    w_pred = 0.1 * jax.random.normal(ks[2], (k * k, ccat, cp), jnp.float32)
    b_pred = 0.1 * jax.random.normal(ks[3], (1, cp), jnp.float32)
    w_fc = 0.1 * jax.random.normal(ks[4], (cp, num_classes), jnp.float32)
    b_fc = jnp.zeros((1, num_classes), jnp.float32)
    return dict(w_seg=w_seg, b_seg=b_seg, w_pred=w_pred, b_pred=b_pred,
                w_fc=w_fc, b_fc=b_fc)


def _reference_forward(x_nchw, params):
    """Plain-XLA reference with identical semantics (f32)."""
    x = jnp.transpose(x_nchw, (0, 2, 3, 1))                     # NHWC
    k = 3
    cin = x.shape[-1]
    hi = lax.Precision.HIGHEST
    w_seg = params["w_seg"].reshape(k, k, cin, -1)              # HWIO
    seg = lax.conv_general_dilated(
        x, w_seg, (1, 1), "SAME", dimension_numbers=("NHWC", "HWIO", "NHWC"),
        precision=hi) + params["b_seg"][0]
    cat = jnp.concatenate([x, lax.stop_gradient(seg)], axis=-1)
    w_pred = params["w_pred"].reshape(k, k, cat.shape[-1], -1)
    h = lax.conv_general_dilated(
        cat, w_pred, (1, 1), "SAME", dimension_numbers=("NHWC", "HWIO", "NHWC"),
        precision=hi) + params["b_pred"][0]
    h = jnp.maximum(h, 0.0)
    pooled = h.mean(axis=(1, 2))
    logits = jnp.dot(pooled, params["w_fc"], precision=hi) + params["b_fc"][0]
    return jnp.transpose(seg, (0, 3, 1, 2)), logits


if __name__ == "__main__":
    key = jax.random.PRNGKey(0)
    k_x, k_p = jax.random.split(key)

    N, C, H, W = 2, 4, 16, 16
    x = jax.random.normal(k_x, (N, C, H, W), jnp.float32)       # PyTorch NCHW input
    params = init_params(k_p, cin=C)

    seg_masks, logits = jax.jit(combined_model_forward)(x, params)
    jax.block_until_ready((seg_masks, logits))

    assert seg_masks.shape == (N, 2, H, W)
    assert logits.shape == (N, 3)

    # Sanity-check against the plain-XLA reference (f32 compute on both sides).
    seg_ref, logits_ref = _reference_forward(x, params)
    assert jnp.allclose(seg_masks, seg_ref, atol=1e-2, rtol=1e-2), (
        "seg mismatch", float(jnp.max(jnp.abs(seg_masks - seg_ref))))
    assert jnp.allclose(logits, logits_ref, atol=1e-2, rtol=1e-2), (
        "logits mismatch", float(jnp.max(jnp.abs(logits - logits_ref))))

    print("KERNEL_OK")
</pallas_src>

<mosaic_0001>
module attributes {stable_mosaic.version = 11 : i64} {
  func.func @kernel(%arg0: i32, %arg1: memref<1x4x384xf32, #tpu.memory_space<vmem>>, %arg2: memref<1x384xf32, #tpu.memory_space<vmem>>, %arg3: memref<2x36xf32, #tpu.memory_space<vmem>>, %arg4: memref<2x1xf32, #tpu.memory_space<vmem>>, %arg5: memref<8x36xf32, #tpu.memory_space<vmem>>, %arg6: memref<8x18xf32, #tpu.memory_space<vmem>>, %arg7: memref<8x1xf32, #tpu.memory_space<vmem>>, %arg8: memref<3x8xf32, #tpu.memory_space<vmem>>, %arg9: memref<3x1xf32, #tpu.memory_space<vmem>>, %arg10: memref<1x2x384xf32, #tpu.memory_space<vmem>>, %arg11: memref<1x3x1xf32, #tpu.memory_space<vmem>>, %arg12: memref<36x384xf32, #tpu.memory_space<vmem>>, %arg13: memref<18x384xf32, #tpu.memory_space<vmem>>) attributes {dimension_semantics = [#tpu.dimension_semantics<parallel>], iteration_bounds = array<i64: 2>, scalar_prefetch = 0 : i64, scratch_operands = 2 : i64, tpu.core_type = #tpu.core_type<tc>, window_params = [{transform_indices = @transform_0, window_bounds = array<i64: 1, 4, 384>}, {pipeline_mode = #tpu.pipeline_mode<synchronous>, transform_indices = @transform_1, window_bounds = array<i64: 1, 384>}, {pipeline_mode = #tpu.pipeline_mode<synchronous>, transform_indices = @transform_2, window_bounds = array<i64: 2, 36>}, {pipeline_mode = #tpu.pipeline_mode<synchronous>, transform_indices = @transform_3, window_bounds = array<i64: 2, 1>}, {pipeline_mode = #tpu.pipeline_mode<synchronous>, transform_indices = @transform_4, window_bounds = array<i64: 8, 36>}, {pipeline_mode = #tpu.pipeline_mode<synchronous>, transform_indices = @transform_5, window_bounds = array<i64: 8, 18>}, {pipeline_mode = #tpu.pipeline_mode<synchronous>, transform_indices = @transform_6, window_bounds = array<i64: 8, 1>}, {pipeline_mode = #tpu.pipeline_mode<synchronous>, transform_indices = @transform_7, window_bounds = array<i64: 3, 8>}, {pipeline_mode = #tpu.pipeline_mode<synchronous>, transform_indices = @transform_8, window_bounds = array<i64: 3, 1>}, {transform_indices = @transform_9, window_bounds = array<i64: 1, 2, 384>}, {transform_indices = @transform_10, window_bounds = array<i64: 1, 3, 1>}]} {
    %c0 = arith.constant 0 : index
    %c0_0 = arith.constant 0 : index
    %0 = vector.load %arg2[%c0, %c0_0] : memref<1x384xf32, #tpu.memory_space<vmem>>, vector<1x384xf32>
    %c0_1 = arith.constant 0 : index
    %c0_2 = arith.constant 0 : index
    %1 = vector.load %arg3[%c0_1, %c0_2] : memref<2x36xf32, #tpu.memory_space<vmem>>, vector<2x36xf32>
    %c0_3 = arith.constant 0 : index
    %c0_4 = arith.constant 0 : index
    %2 = vector.load %arg5[%c0_3, %c0_4] : memref<8x36xf32, #tpu.memory_space<vmem>>, vector<8x36xf32>
    %c0_5 = arith.constant 0 : index
    %c0_6 = arith.constant 0 : index
    %3 = vector.load %arg6[%c0_5, %c0_6] : memref<8x18xf32, #tpu.memory_space<vmem>>, vector<8x18xf32>
    %c0_7 = arith.constant 0 : index
    %c0_8 = arith.constant 0 : index
    %4 = vector.load %arg4[%c0_7, %c0_8] : memref<2x1xf32, #tpu.memory_space<vmem>>, vector<2x1xf32>
    %c0_9 = arith.constant 0 : index
    %c0_10 = arith.constant 0 : index
    %5 = vector.load %arg7[%c0_9, %c0_10] : memref<8x1xf32, #tpu.memory_space<vmem>>, vector<8x1xf32>
    %c0_11 = arith.constant 0 : index
    %c0_12 = arith.constant 0 : index
    %6 = vector.load %arg8[%c0_11, %c0_12] : memref<3x8xf32, #tpu.memory_space<vmem>>, vector<3x8xf32>
    %c0_13 = arith.constant 0 : index
    %c0_14 = arith.constant 0 : index
    %7 = vector.load %arg9[%c0_13, %c0_14] : memref<3x1xf32, #tpu.memory_space<vmem>>, vector<3x1xf32>
    %c0_15 = arith.constant 0 : index
    %c0_16 = arith.constant 0 : index
    %c0_17 = arith.constant 0 : index
    %8 = vector.load %arg1[%c0_15, %c0_16, %c0_17] : memref<1x4x384xf32, #tpu.memory_space<vmem>>, vector<1x4x384xf32>
    %9 = vector.shape_cast %8 : vector<1x4x384xf32> to vector<4x384xf32>
    %c0_18 = arith.constant 0 : index
    %c0_19 = arith.constant 0 : index
    %10 = vector.load %arg12[%c0_18, %c0_19] : memref<36x384xf32, #tpu.memory_space<vmem>>, vector<4x384xf32>
    tpu.vector_store %arg12[%c0_18, %c0_19], %9 {strides = array<i32>} : memref<36x384xf32, #tpu.memory_space<vmem>>, vector<4x384xf32>,
    %c383_i32 = arith.constant 383 : i32
    %11 = tpu.dynamic_rotate %9 by %c383_i32 dim 1 : vector<4x384xf32>, i32 -> vector<4x384xf32>
    %c4 = arith.constant 4 : index
    %c0_20 = arith.constant 0 : index
    %12 = vector.load %arg12[%c4, %c0_20] : memref<36x384xf32, #tpu.memory_space<vmem>>, vector<4x384xf32>
    tpu.vector_store %arg12[%c4, %c0_20], %11 {strides = array<i32>} : memref<36x384xf32, #tpu.memory_space<vmem>>, vector<4x384xf32>,
    %c382_i32 = arith.constant 382 : i32
    %13 = tpu.dynamic_rotate %9 by %c382_i32 dim 1 : vector<4x384xf32>, i32 -> vector<4x384xf32>
    %c8 = arith.constant 8 : index
    %c0_21 = arith.constant 0 : index
    %14 = vector.load %arg12[%c8, %c0_21] : memref<36x384xf32, #tpu.memory_space<vmem>>, vector<4x384xf32>
    tpu.vector_store %arg12[%c8, %c0_21], %13 {strides = array<i32>} : memref<36x384xf32, #tpu.memory_space<vmem>>, vector<4x384xf32>,
    %c366_i32 = arith.constant 366 : i32
    %15 = tpu.dynamic_rotate %9 by %c366_i32 dim 1 : vector<4x384xf32>, i32 -> vector<4x384xf32>
    %c12 = arith.constant 12 : index
    %c0_22 = arith.constant 0 : index
    %16 = vector.load %arg12[%c12, %c0_22] : memref<36x384xf32, #tpu.memory_space<vmem>>, vector<4x384xf32>
    tpu.vector_store %arg12[%c12, %c0_22], %15 {strides = array<i32>} : memref<36x384xf32, #tpu.memory_space<vmem>>, vector<4x384xf32>,
    %c365_i32 = arith.constant 365 : i32
    %17 = tpu.dynamic_rotate %9 by %c365_i32 dim 1 : vector<4x384xf32>, i32 -> vector<4x384xf32>
    %c16 = arith.constant 16 : index
    %c0_23 = arith.constant 0 : index
    %18 = vector.load %arg12[%c16, %c0_23] : memref<36x384xf32, #tpu.memory_space<vmem>>, vector<4x384xf32>
    tpu.vector_store %arg12[%c16, %c0_23], %17 {strides = array<i32>} : memref<36x384xf32, #tpu.memory_space<vmem>>, vector<4x384xf32>,
    %c364_i32 = arith.constant 364 : i32
    %19 = tpu.dynamic_rotate %9 by %c364_i32 dim 1 : vector<4x384xf32>, i32 -> vector<4x384xf32>
    %c20 = arith.constant 20 : index
    %c0_24 = arith.constant 0 : index
    %20 = vector.load %arg12[%c20, %c0_24] : memref<36x384xf32, #tpu.memory_space<vmem>>, vector<4x384xf32>
    tpu.vector_store %arg12[%c20, %c0_24], %19 {strides = array<i32>} : memref<36x384xf32, #tpu.memory_space<vmem>>, vector<4x384xf32>,
    %c348_i32 = arith.constant 348 : i32
    %21 = tpu.dynamic_rotate %9 by %c348_i32 dim 1 : vector<4x384xf32>, i32 -> vector<4x384xf32>
    %c24 = arith.constant 24 : index
    %c0_25 = arith.constant 0 : index
    %22 = vector.load %arg12[%c24, %c0_25] : memref<36x384xf32, #tpu.memory_space<vmem>>, vector<4x384xf32>
    tpu.vector_store %arg12[%c24, %c0_25], %21 {strides = array<i32>} : memref<36x384xf32, #tpu.memory_space<vmem>>, vector<4x384xf32>,
    %c347_i32 = arith.constant 347 : i32
    %23 = tpu.dynamic_rotate %9 by %c347_i32 dim 1 : vector<4x384xf32>, i32 -> vector<4x384xf32>
    %c28 = arith.constant 28 : index
    %c0_26 = arith.constant 0 : index
    %24 = vector.load %arg12[%c28, %c0_26] : memref<36x384xf32, #tpu.memory_space<vmem>>, vector<4x384xf32>
    tpu.vector_store %arg12[%c28, %c0_26], %23 {strides = array<i32>} : memref<36x384xf32, #tpu.memory_space<vmem>>, vector<4x384xf32>,
    %c346_i32 = arith.constant 346 : i32
    %25 = tpu.dynamic_rotate %9 by %c346_i32 dim 1 : vector<4x384xf32>, i32 -> vector<4x384xf32>
    %c32 = arith.constant 32 : index
    %c0_27 = arith.constant 0 : index
    %26 = vector.load %arg12[%c32, %c0_27] : memref<36x384xf32, #tpu.memory_space<vmem>>, vector<4x384xf32>
    tpu.vector_store %arg12[%c32, %c0_27], %25 {strides = array<i32>} : memref<36x384xf32, #tpu.memory_space<vmem>>, vector<4x384xf32>,
    %c0_28 = arith.constant 0 : index
    %c0_29 = arith.constant 0 : index
    %27 = vector.load %arg12[%c0_28, %c0_29] : memref<36x384xf32, #tpu.memory_space<vmem>>, vector<36x384xf32>
    %cst = arith.constant dense<0.000000e+00> : vector<2x384xf32>
    %28 = tpu.matmul %1, %27, %cst {dimension_numbers = #tpu.dot_dimension_numbers<[1], [0], [0], [1], [0, 0, 1, 1], [], []>} : vector<2x36xf32>, vector<36x384xf32>, vector<2x384xf32> -> vector<2x384xf32>
    %29 = vector.broadcast %4 : vector<2x1xf32> to vector<2x384xf32>
    %30 = arith.addf %28, %29 : vector<2x384xf32>
    %c0_30 = arith.constant 0 : index
    %c0_31 = arith.constant 0 : index
    %c0_32 = arith.constant 0 : index
    %31 = vector.load %arg10[%c0_30, %c0_31, %c0_32] : memref<1x2x384xf32, #tpu.memory_space<vmem>>, vector<1x2x384xf32>
    %32 = vector.shape_cast %31 : vector<1x2x384xf32> to vector<2x384xf32>
    %33 = vector.shape_cast %30 : vector<2x384xf32> to vector<1x2x384xf32>
    tpu.vector_store %arg10[%c0_30, %c0_31, %c0_32], %33 {strides = array<i32>} : memref<1x2x384xf32, #tpu.memory_space<vmem>>, vector<1x2x384xf32>,
    %34 = vector.broadcast %0 : vector<1x384xf32> to vector<2x384xf32>
    %35 = arith.mulf %30, %34 : vector<2x384xf32>
    %c19_i32 = arith.constant 19 : i32
    %36 = tpu.dynamic_rotate %35 by %c19_i32 dim 1 : vector<2x384xf32>, i32 -> vector<2x384xf32>
    %c0_33 = arith.constant 0 : index
    %c0_34 = arith.constant 0 : index
    %37 = vector.load %arg13[%c0_33, %c0_34] : memref<18x384xf32, #tpu.memory_space<vmem>>, vector<2x384xf32>
    tpu.vector_store %arg13[%c0_33, %c0_34], %36 {strides = array<i32>} : memref<18x384xf32, #tpu.memory_space<vmem>>, vector<2x384xf32>,
    %c383_i32_35 = arith.constant 383 : i32
    %38 = tpu.dynamic_rotate %36 by %c383_i32_35 dim 1 : vector<2x384xf32>, i32 -> vector<2x384xf32>
    %c2 = arith.constant 2 : index
    %c0_36 = arith.constant 0 : index
    %39 = vector.load %arg13[%c2, %c0_36] : memref<18x384xf32, #tpu.memory_space<vmem>>, vector<2x384xf32>
    tpu.vector_store %arg13[%c2, %c0_36], %38 {strides = array<i32>} : memref<18x384xf32, #tpu.memory_space<vmem>>, vector<2x384xf32>,
    %c382_i32_37 = arith.constant 382 : i32
    %40 = tpu.dynamic_rotate %36 by %c382_i32_37 dim 1 : vector<2x384xf32>, i32 -> vector<2x384xf32>
    %c4_38 = arith.constant 4 : index
    %c0_39 = arith.constant 0 : index
    %41 = vector.load %arg13[%c4_38, %c0_39] : memref<18x384xf32, #tpu.memory_space<vmem>>, vector<2x384xf32>
    tpu.vector_store %arg13[%c4_38, %c0_39], %40 {strides = array<i32>} : memref<18x384xf32, #tpu.memory_space<vmem>>, vector<2x384xf32>,
    %c366_i32_40 = arith.constant 366 : i32
    %42 = tpu.dynamic_rotate %36 by %c366_i32_40 dim 1 : vector<2x384xf32>, i32 -> vector<2x384xf32>
    %c6 = arith.constant 6 : index
    %c0_41 = arith.constant 0 : index
    %43 = vector.load %arg13[%c6, %c0_41] : memref<18x384xf32, #tpu.memory_space<vmem>>, vector<2x384xf32>
    tpu.vector_store %arg13[%c6, %c0_41], %42 {strides = array<i32>} : memref<18x384xf32, #tpu.memory_space<vmem>>, vector<2x384xf32>,
    %c365_i32_42 = arith.constant 365 : i32
    %44 = tpu.dynamic_rotate %36 by %c365_i32_42 dim 1 : vector<2x384xf32>, i32 -> vector<2x384xf32>
    %c8_43 = arith.constant 8 : index
    %c0_44 = arith.constant 0 : index
    %45 = vector.load %arg13[%c8_43, %c0_44] : memref<18x384xf32, #tpu.memory_space<vmem>>, vector<2x384xf32>
    tpu.vector_store %arg13[%c8_43, %c0_44], %44 {strides = array<i32>} : memref<18x384xf32, #tpu.memory_space<vmem>>, vector<2x384xf32>,
    %c364_i32_45 = arith.constant 364 : i32
    %46 = tpu.dynamic_rotate %36 by %c364_i32_45 dim 1 : vector<2x384xf32>, i32 -> vector<2x384xf32>
    %c10 = arith.constant 10 : index
    %c0_46 = arith.constant 0 : index
    %47 = vector.load %arg13[%c10, %c0_46] : memref<18x384xf32, #tpu.memory_space<vmem>>, vector<2x384xf32>
    tpu.vector_store %arg13[%c10, %c0_46], %46 {strides = array<i32>} : memref<18x384xf32, #tpu.memory_space<vmem>>, vector<2x384xf32>,
    %c348_i32_47 = arith.constant 348 : i32
    %48 = tpu.dynamic_rotate %36 by %c348_i32_47 dim 1 : vector<2x384xf32>, i32 -> vector<2x384xf32>
    %c12_48 = arith.constant 12 : index
    %c0_49 = arith.constant 0 : index
    %49 = vector.load %arg13[%c12_48, %c0_49] : memref<18x384xf32, #tpu.memory_space<vmem>>, vector<2x384xf32>
    tpu.vector_store %arg13[%c12_48, %c0_49], %48 {strides = array<i32>} : memref<18x384xf32, #tpu.memory_space<vmem>>, vector<2x384xf32>,
    %c347_i32_50 = arith.constant 347 : i32
    %50 = tpu.dynamic_rotate %36 by %c347_i32_50 dim 1 : vector<2x384xf32>, i32 -> vector<2x384xf32>
    %c14 = arith.constant 14 : index
    %c0_51 = arith.constant 0 : index
    %51 = vector.load %arg13[%c14, %c0_51] : memref<18x384xf32, #tpu.memory_space<vmem>>, vector<2x384xf32>
    tpu.vector_store %arg13[%c14, %c0_51], %50 {strides = array<i32>} : memref<18x384xf32, #tpu.memory_space<vmem>>, vector<2x384xf32>,
    %c346_i32_52 = arith.constant 346 : i32
    %52 = tpu.dynamic_rotate %36 by %c346_i32_52 dim 1 : vector<2x384xf32>, i32 -> vector<2x384xf32>
    %c16_53 = arith.constant 16 : index
    %c0_54 = arith.constant 0 : index
    %53 = vector.load %arg13[%c16_53, %c0_54] : memref<18x384xf32, #tpu.memory_space<vmem>>, vector<2x384xf32>
    tpu.vector_store %arg13[%c16_53, %c0_54], %52 {strides = array<i32>} : memref<18x384xf32, #tpu.memory_space<vmem>>, vector<2x384xf32>,
    %c0_55 = arith.constant 0 : index
    %c0_56 = arith.constant 0 : index
    %54 = vector.load %arg13[%c0_55, %c0_56] : memref<18x384xf32, #tpu.memory_space<vmem>>, vector<18x384xf32>
    %cst_57 = arith.constant dense<0.000000e+00> : vector<8x384xf32>
    %55 = tpu.matmul %2, %27, %cst_57 {dimension_numbers = #tpu.dot_dimension_numbers<[1], [0], [0], [1], [0, 0, 1, 1], [], []>} : vector<8x36xf32>, vector<36x384xf32>, vector<8x384xf32> -> vector<8x384xf32>
    %cst_58 = arith.constant dense<0.000000e+00> : vector<8x384xf32>
    %56 = tpu.matmul %3, %54, %cst_58 {dimension_numbers = #tpu.dot_dimension_numbers<[1], [0], [0], [1], [0, 0, 1, 1], [], []>} : vector<8x18xf32>, vector<18x384xf32>, vector<8x384xf32> -> vector<8x384xf32>
    %57 = arith.addf %55, %56 : vector<8x384xf32>
    %58 = vector.broadcast %5 : vector<8x1xf32> to vector<8x384xf32>
    %59 = arith.addf %57, %58 : vector<8x384xf32>
    %cst_59 = arith.constant 0.000000e+00 : f32
    %60 = vector.broadcast %cst_59 : f32 to vector<8x384xf32>
    %61 = arith.maximumf %59, %60 : vector<8x384xf32>
    %62 = vector.broadcast %0 : vector<1x384xf32> to vector<8x384xf32>
    %63 = arith.mulf %61, %62 : vector<8x384xf32>
    %cst_60 = arith.constant dense<0.000000e+00> : vector<8xf32>
    %64 = vector.multi_reduction <add>, %63, %cst_60 [1] : vector<8x384xf32> to vector<8xf32>
    %65 = vector.shape_cast %64 : vector<8xf32> to vector<8x1xf32>
    %cst_61 = arith.constant 3.906250e-03 : f32
    %66 = vector.broadcast %cst_61 : f32 to vector<8x1xf32>
    %67 = arith.mulf %65, %66 : vector<8x1xf32>
    %cst_62 = arith.constant dense<0.000000e+00> : vector<3x1xf32>
    %68 = tpu.matmul %6, %67, %cst_62 {dimension_numbers = #tpu.dot_dimension_numbers<[1], [0], [0], [1], [0, 0, 1, 1], [], []>} : vector<3x8xf32>, vector<8x1xf32>, vector<3x1xf32> -> vector<3x1xf32>
    %69 = arith.addf %68, %7 : vector<3x1xf32>
    %c0_63 = arith.constant 0 : index
    %c0_64 = arith.constant 0 : index
    %c0_65 = arith.constant 0 : index
    %70 = vector.load %arg11[%c0_63, %c0_64, %c0_65] : memref<1x3x1xf32, #tpu.memory_space<vmem>>, vector<1x3x1xf32>
    %71 = vector.shape_cast %70 : vector<1x3x1xf32> to vector<3x1xf32>
    %72 = vector.shape_cast %69 : vector<3x1xf32> to vector<1x3x1xf32>
    tpu.vector_store %arg11[%c0_63, %c0_64, %c0_65], %72 {strides = array<i32>} : memref<1x3x1xf32, #tpu.memory_space<vmem>>, vector<1x3x1xf32>,
    return
  }
  func.func @transform_0(%arg0: i32) -> (i32, i32, i32) {
    %c0_i32 = arith.constant 0 : i32
    %c0_i32_0 = arith.constant 0 : i32
    %c0_i32_1 = arith.constant 0 : i32
    return %arg0, %c0_i32, %c0_i32_0 : i32, i32, i32
  }
  func.func @transform_1(%arg0: i32) -> (i32, i32) {
    %c0_i32 = arith.constant 0 : i32
    %c0_i32_0 = arith.constant 0 : i32
    %c0_i32_1 = arith.constant 0 : i32
    return %c0_i32, %c0_i32_0 : i32, i32
  }
  func.func @transform_2(%arg0: i32) -> (i32, i32) {
    %c0_i32 = arith.constant 0 : i32
    %c0_i32_0 = arith.constant 0 : i32
    %c0_i32_1 = arith.constant 0 : i32
    return %c0_i32, %c0_i32_0 : i32, i32
  }
  func.func @transform_3(%arg0: i32) -> (i32, i32) {
    %c0_i32 = arith.constant 0 : i32
    %c0_i32_0 = arith.constant 0 : i32
    %c0_i32_1 = arith.constant 0 : i32
    return %c0_i32, %c0_i32_0 : i32, i32
  }
  func.func @transform_4(%arg0: i32) -> (i32, i32) {
    %c0_i32 = arith.constant 0 : i32
    %c0_i32_0 = arith.constant 0 : i32
    %c0_i32_1 = arith.constant 0 : i32
    return %c0_i32, %c0_i32_0 : i32, i32
  }
  func.func @transform_5(%arg0: i32) -> (i32, i32) {
    %c0_i32 = arith.constant 0 : i32
    %c0_i32_0 = arith.constant 0 : i32
    %c0_i32_1 = arith.constant 0 : i32
    return %c0_i32, %c0_i32_0 : i32, i32
  }
  func.func @transform_6(%arg0: i32) -> (i32, i32) {
    %c0_i32 = arith.constant 0 : i32
    %c0_i32_0 = arith.constant 0 : i32
    %c0_i32_1 = arith.constant 0 : i32
    return %c0_i32, %c0_i32_0 : i32, i32
  }
  func.func @transform_7(%arg0: i32) -> (i32, i32) {
    %c0_i32 = arith.constant 0 : i32
    %c0_i32_0 = arith.constant 0 : i32
    %c0_i32_1 = arith.constant 0 : i32
    return %c0_i32, %c0_i32_0 : i32, i32
  }
  func.func @transform_8(%arg0: i32) -> (i32, i32) {
    %c0_i32 = arith.constant 0 : i32
    %c0_i32_0 = arith.constant 0 : i32
    %c0_i32_1 = arith.constant 0 : i32
    return %c0_i32, %c0_i32_0 : i32, i32
  }
  func.func @transform_9(%arg0: i32) -> (i32, i32, i32) {
    %c0_i32 = arith.constant 0 : i32
    %c0_i32_0 = arith.constant 0 : i32
    %c0_i32_1 = arith.constant 0 : i32
    return %arg0, %c0_i32, %c0_i32_0 : i32, i32, i32
  }
  func.func @transform_10(%arg0: i32) -> (i32, i32, i32) {
    %c0_i32 = arith.constant 0 : i32
    %c0_i32_0 = arith.constant 0 : i32
    %c0_i32_1 = arith.constant 0 : i32
    return %arg0, %c0_i32, %c0_i32_0 : i32, i32, i32
  }
}

</mosaic_0001>

<llo_original>
// kernel: combined_model_forward.1
$region0: #{combined_model_forward.1}
  #allocation0 [shape = 'u32[]', space=smem, size = 0x4, offset = 0x4, fixed_abs, tag = 'smem constant byte address 0x4 - core index']
  #allocation1 [shape = 'u32[72,128]{1,0:T(1,128)}', space=vmem, size = 0x9000, scoped, tag = 'internal scratch']
  #allocation2 [shape = 'f32[36,384]{1,0:T(8,128)}', space=vmem, size = 0xf000, scoped, tag = 'scratch operand']
  #allocation3 [shape = 'f32[18,384]{1,0:T(8,128)}', space=vmem, size = 0x9000, scoped, tag = 'scratch operand']
  %s0 = inlined_call_operand.vmem [shape: f32[2,4,384], index: 0, kind: input, shape index: {}]
  %s1 = inlined_call_operand.vmem [shape: f32[1,384], index: 1, kind: input, shape index: {}]
  %s2 = inlined_call_operand.vmem [shape: f32[2,36], index: 2, kind: input, shape index: {}]
  %s3 = inlined_call_operand.vmem [shape: f32[2,1], index: 3, kind: input, shape index: {}]
  %s4 = inlined_call_operand.vmem [shape: f32[8,36], index: 4, kind: input, shape index: {}]
  %s5 = inlined_call_operand.vmem [shape: f32[8,18], index: 5, kind: input, shape index: {}]
  %s6 = inlined_call_operand.vmem [shape: f32[8,1], index: 6, kind: input, shape index: {}]
  %s7 = inlined_call_operand.vmem [shape: f32[3,8], index: 7, kind: input, shape index: {}]
  %s8 = inlined_call_operand.vmem [shape: f32[3,1], index: 8, kind: input, shape index: {}]
  %s9 = inlined_call_operand.vmem [shape: f32[2,2,384], index: 9, kind: output, shape index: {0}]
  %s10 = inlined_call_operand.vmem [shape: f32[2,3,1], index: 10, kind: output, shape index: {1}]
  %11 = xla_tuple %s9, %s10
  %s12 = sld [smem:[#allocation0]]
  $region77: #{combined_model_forward.1} parent=0
    _
  %s14 = ssub.s32 1, %s12
  %s15 = scalar_select 0, %s14, %s12
  loop: start=0, step=1, limit=4
  $region2: #{combined_model_forward.1} parent=0 // loop_pre_header
    _
  $region3: #{combined_model_forward.1} parent=0 // loop_header
    %s17 = sphi 0, %s21
    %p18 = scmp.ge.s32.totalorder %s17, 4
    %s27 = sphi 0, %s29
    %s30 = sphi 0, %s27
    %s31 = sphi 0, %s30
    %s47 = sphi 0, %s31
    %s51 = sphi 0, %s51
    %s53 = sphi 0, %s51
    %s54 = sphi 0, %s53
    %s68 = sphi 0, %s54
    %s72 = sphi 0, %s72
    %s74 = sphi 0, %s72
    %s75 = sphi 0, %s74
    %s89 = sphi 0, %s75
    %s93 = sphi 0, %s93
    %s95 = sphi 0, %s93
    %s96 = sphi 0, %s95
    %s110 = sphi 0, %s96
    %s114 = sphi 0, %s114
    %s116 = sphi 0, %s114
    %s117 = sphi 0, %s116
    %s131 = sphi 0, %s117
    %s135 = sphi 0, %s135
    %s137 = sphi 0, %s135
    %s138 = sphi 0, %s137
    %s152 = sphi 0, %s138
    %s156 = sphi 0, %s156
    %s158 = sphi 0, %s156
    %s159 = sphi 0, %s158
    %s173 = sphi 0, %s159
    %s177 = sphi 0, %s177
    %s179 = sphi 0, %s177
    %s180 = sphi 0, %s179
    %s194 = sphi 0, %s180
    %s198 = sphi 0, %s198
    %s200 = sphi 0, %s198
    %s201 = sphi 0, %s200
    %s215 = sphi 0, %s201
    %s221 = sphi 0, %s223
    %s224 = sphi 0, %s221
    %s225 = sphi 0, %s224
    %s241 = sphi 0, %s225
    %s247 = sphi 0, %s249
    %s250 = sphi 0, %s247
    %s251 = sphi 0, %s250
    %s267 = sphi 0, %s251
  $region4: #{combined_model_forward.1} parent=0 // loop_header_branch
    %20 = sbr.rel (%p18) target = $region8
  $region5: #{combined_model_forward.1} parent=0 // loop_body
    %s22 = ssub.s32 %s17, 1
    %s23 = ssub.s32 %s17, 2
    %s24 = sadd.s32 %s17, 1
    %s25 = ssub.s32 %s17, %s24
    %p26 = scmp.eq.s32.totalorder %s25, 0
    %s28 = sadd.s32 %s27, 1
    %s29 = scalar_select %p26, %s27, %s28
    %p32 = pneg %p26
    %p33 = scmp.eq.s32.totalorder %s17, 1
    %p34 = por %p32, %p33
    %p35 = scmp.ne.s32.totalorder %s27, %s30
    %p36 = scmp.eq.s32.totalorder %s17, 0
    %p37 = por %p35, %p36
    %p38 = scmp.ne.s32.totalorder %s27, %s30
    %p39 = scmp.eq.s32.totalorder %s22, 1
    %p40 = por %p38, %p39
    %p41 = scmp.ne.s32.totalorder %s30, %s31
    %p42 = scmp.eq.s32.totalorder %s22, 0
    %p43 = por %p41, %p42
    %p44 = scmp.ne.s32.totalorder %s30, %s31
    %p45 = scmp.eq.s32.totalorder %s23, 1
    %p46 = por %p44, %p45
    %p48 = scmp.ne.s32.totalorder %s31, %s47
    %p49 = scmp.eq.s32.totalorder %s23, 0
    %p50 = por %p48, %p49
    %s52 = sadd.s32 %s51, 1
    %p55 = scmp.eq.s32.totalorder %s17, 1
    %p56 = scmp.ne.s32.totalorder %s51, %s53
    %p57 = scmp.eq.s32.totalorder %s17, 0
    %p58 = por %p56, %p57
    %p59 = scmp.ne.s32.totalorder %s51, %s53
    %p60 = scmp.eq.s32.totalorder %s22, 1
    %p61 = por %p59, %p60
    %p62 = scmp.ne.s32.totalorder %s53, %s54
    %p63 = scmp.eq.s32.totalorder %s22, 0
    %p64 = por %p62, %p63
    %p65 = scmp.ne.s32.totalorder %s53, %s54
    %p66 = scmp.eq.s32.totalorder %s23, 1
    %p67 = por %p65, %p66
    %p69 = scmp.ne.s32.totalorder %s54, %s68
    %p70 = scmp.eq.s32.totalorder %s23, 0
    %p71 = por %p69, %p70
    %s73 = sadd.s32 %s72, 1
    %p76 = scmp.eq.s32.totalorder %s17, 1
    %p77 = scmp.ne.s32.totalorder %s72, %s74
    %p78 = scmp.eq.s32.totalorder %s17, 0
    %p79 = por %p77, %p78
    %p80 = scmp.ne.s32.totalorder %s72, %s74
    %p81 = scmp.eq.s32.totalorder %s22, 1
    %p82 = por %p80, %p81
    %p83 = scmp.ne.s32.totalorder %s74, %s75
    %p84 = scmp.eq.s32.totalorder %s22, 0
    %p85 = por %p83, %p84
    %p86 = scmp.ne.s32.totalorder %s74, %s75
    %p87 = scmp.eq.s32.totalorder %s23, 1
    %p88 = por %p86, %p87
    %p90 = scmp.ne.s32.totalorder %s75, %s89
    %p91 = scmp.eq.s32.totalorder %s23, 0
    %p92 = por %p90, %p91
    %s94 = sadd.s32 %s93, 1
    %p97 = scmp.eq.s32.totalorder %s17, 1
    %p98 = scmp.ne.s32.totalorder %s93, %s95
    %p99 = scmp.eq.s32.totalorder %s17, 0
    %p100 = por %p98, %p99
    %p101 = scmp.ne.s32.totalorder %s93, %s95
    %p102 = scmp.eq.s32.totalorder %s22, 1
    %p103 = por %p101, %p102
    %p104 = scmp.ne.s32.totalorder %s95, %s96
    %p105 = scmp.eq.s32.totalorder %s22, 0
    %p106 = por %p104, %p105
    %p107 = scmp.ne.s32.totalorder %s95, %s96
    %p108 = scmp.eq.s32.totalorder %s23, 1
    %p109 = por %p107, %p108
    %p111 = scmp.ne.s32.totalorder %s96, %s110
    %p112 = scmp.eq.s32.totalorder %s23, 0
    %p113 = por %p111, %p112
    %s115 = sadd.s32 %s114, 1
    %p118 = scmp.eq.s32.totalorder %s17, 1
    %p119 = scmp.ne.s32.totalorder %s114, %s116
    %p120 = scmp.eq.s32.totalorder %s17, 0
    %p121 = por %p119, %p120
    %p122 = scmp.ne.s32.totalorder %s114, %s116
    %p123 = scmp.eq.s32.totalorder %s22, 1
    %p124 = por %p122, %p123
    %p125 = scmp.ne.s32.totalorder %s116, %s117
    %p126 = scmp.eq.s32.totalorder %s22, 0
    %p127 = por %p125, %p126
    %p128 = scmp.ne.s32.totalorder %s116, %s117
    %p129 = scmp.eq.s32.totalorder %s23, 1
    %p130 = por %p128, %p129
    %p132 = scmp.ne.s32.totalorder %s117, %s131
    %p133 = scmp.eq.s32.totalorder %s23, 0
    %p134 = por %p132, %p133
    %s136 = sadd.s32 %s135, 1
    %p139 = scmp.eq.s32.totalorder %s17, 1
    %p140 = scmp.ne.s32.totalorder %s135, %s137
    %p141 = scmp.eq.s32.totalorder %s17, 0
    %p142 = por %p140, %p141
    %p143 = scmp.ne.s32.totalorder %s135, %s137
    %p144 = scmp.eq.s32.totalorder %s22, 1
    %p145 = por %p143, %p144
    %p146 = scmp.ne.s32.totalorder %s137, %s138
    %p147 = scmp.eq.s32.totalorder %s22, 0
    %p148 = por %p146, %p147
    %p149 = scmp.ne.s32.totalorder %s137, %s138
    %p150 = scmp.eq.s32.totalorder %s23, 1
    %p151 = por %p149, %p150
    %p153 = scmp.ne.s32.totalorder %s138, %s152
    %p154 = scmp.eq.s32.totalorder %s23, 0
    %p155 = por %p153, %p154
    %s157 = sadd.s32 %s156, 1
    %p160 = scmp.eq.s32.totalorder %s17, 1
    %p161 = scmp.ne.s32.totalorder %s156, %s158
    %p162 = scmp.eq.s32.totalorder %s17, 0
    %p163 = por %p161, %p162
    %p164 = scmp.ne.s32.totalorder %s156, %s158
    %p165 = scmp.eq.s32.totalorder %s22, 1
    %p166 = por %p164, %p165
    %p167 = scmp.ne.s32.totalorder %s158, %s159
    %p168 = scmp.eq.s32.totalorder %s22, 0
    %p169 = por %p167, %p168
    %p170 = scmp.ne.s32.totalorder %s158, %s159
    %p171 = scmp.eq.s32.totalorder %s23, 1
    %p172 = por %p170, %p171
    %p174 = scmp.ne.s32.totalorder %s159, %s173
    %p175 = scmp.eq.s32.totalorder %s23, 0
    %p176 = por %p174, %p175
    %s178 = sadd.s32 %s177, 1
    %p181 = scmp.eq.s32.totalorder %s17, 1
    %p182 = scmp.ne.s32.totalorder %s177, %s179
    %p183 = scmp.eq.s32.totalorder %s17, 0
    %p184 = por %p182, %p183
    %p185 = scmp.ne.s32.totalorder %s177, %s179
    %p186 = scmp.eq.s32.totalorder %s22, 1
    %p187 = por %p185, %p186
    %p188 = scmp.ne.s32.totalorder %s179, %s180
    %p189 = scmp.eq.s32.totalorder %s22, 0
    %p190 = por %p188, %p189
    %p191 = scmp.ne.s32.totalorder %s179, %s180
    %p192 = scmp.eq.s32.totalorder %s23, 1
    %p193 = por %p191, %p192
    %p195 = scmp.ne.s32.totalorder %s180, %s194
    %p196 = scmp.eq.s32.totalorder %s23, 0
    %p197 = por %p195, %p196
    %s199 = sadd.s32 %s198, 1
    %p202 = scmp.eq.s32.totalorder %s17, 1
    %p203 = scmp.ne.s32.totalorder %s198, %s200
    %p204 = scmp.eq.s32.totalorder %s17, 0
    %p205 = por %p203, %p204
    %p206 = scmp.ne.s32.totalorder %s198, %s200
    %p207 = scmp.eq.s32.totalorder %s22, 1
    %p208 = por %p206, %p207
    %p209 = scmp.ne.s32.totalorder %s200, %s201
    %p210 = scmp.eq.s32.totalorder %s22, 0
    %p211 = por %p209, %p210
    %p212 = scmp.ne.s32.totalorder %s200, %s201
    %p213 = scmp.eq.s32.totalorder %s23, 1
    %p214 = por %p212, %p213
    %p216 = scmp.ne.s32.totalorder %s201, %s215
    %p217 = scmp.eq.s32.totalorder %s23, 0
    %p218 = por %p216, %p217
    %s219 = ssub.s32 %s17, %s24
    %p220 = scmp.eq.s32.totalorder %s219, 0
    %s222 = sadd.s32 %s221, 1
    %s223 = scalar_select %p220, %s221, %s222
    %p226 = pneg %p220
    %p227 = scmp.eq.s32.totalorder %s17, 1
    %p228 = por %p226, %p227
    %p229 = scmp.ne.s32.totalorder %s221, %s224
    %p230 = scmp.eq.s32.totalorder %s17, 0
    %p231 = por %p229, %p230
    %p232 = scmp.ne.s32.totalorder %s221, %s224
    %p233 = scmp.eq.s32.totalorder %s22, 1
    %p234 = por %p232, %p233
    %p235 = scmp.ne.s32.totalorder %s224, %s225
    %p236 = scmp.eq.s32.totalorder %s22, 0
    %p237 = por %p235, %p236
    %p238 = scmp.ne.s32.totalorder %s224, %s225
    %p239 = scmp.eq.s32.totalorder %s23, 1
    %p240 = por %p238, %p239
    %p242 = scmp.ne.s32.totalorder %s225, %s241
    %p243 = scmp.eq.s32.totalorder %s23, 0
    %p244 = por %p242, %p243
    %s245 = ssub.s32 %s17, %s24
    %p246 = scmp.eq.s32.totalorder %s245, 0
    %s248 = sadd.s32 %s247, 1
    %s249 = scalar_select %p246, %s247, %s248
    %p252 = pneg %p246
    %p253 = scmp.eq.s32.totalorder %s17, 1
    %p254 = por %p252, %p253
    %p255 = scmp.ne.s32.totalorder %s247, %s250
    %p256 = scmp.eq.s32.totalorder %s17, 0
    %p257 = por %p255, %p256
    %p258 = scmp.ne.s32.totalorder %s247, %s250
    %p259 = scmp.eq.s32.totalorder %s22, 1
    %p260 = por %p258, %p259
    %p261 = scmp.ne.s32.totalorder %s250, %s251
    %p262 = scmp.eq.s32.totalorder %s22, 0
    %p263 = por %p261, %p262
    %p264 = scmp.ne.s32.totalorder %s250, %s251
    %p265 = scmp.eq.s32.totalorder %s23, 1
    %p266 = por %p264, %p265
    %p268 = scmp.ne.s32.totalorder %s251, %s267
    %p269 = scmp.eq.s32.totalorder %s23, 0
    %p270 = por %p268, %p269
    %p271 = scmp.le.s32.totalorder 1, %s17
    %p272 = scmp.lt.s32.totalorder %s17, 3
    %p273 = pnand %p271, %p272
    %p274 = pneg %p273
    // Predicated region
    $region9: #{combined_model_forward.1} parent=5 // pred_check
      _
    $region10: #{combined_model_forward.1} parent=5 // pred_check_branch
      %276 = sbr.rel (%p273) target = $region12
    $region11: #{combined_model_forward.1} parent=5 // pred_region
      %s277 = ssub.s32 %s17, 1
      // Predicated region
      $region13: #{combined_model_forward.1} parent=11 // pred_check
        %p278 = pneg %p64
      $region14: #{combined_model_forward.1} parent=11 // pred_check_branch
        %280 = sbr.rel (%p278) target = $region16
      $region15: #{combined_model_forward.1} parent=11 // pred_region
        _
      $region16: #{combined_model_forward.1} parent=11 // pred_fallthru
        _
      // Predicated region
      $region17: #{combined_model_forward.1} parent=11 // pred_check
        %p281 = pneg %p85
      $region18: #{combined_model_forward.1} parent=11 // pred_check_branch
        %283 = sbr.rel (%p281) target = $region20
      $region19: #{combined_model_forward.1} parent=11 // pred_region
        _
      $region20: #{combined_model_forward.1} parent=11 // pred_fallthru
        _
      // Predicated region
      $region21: #{combined_model_forward.1} parent=11 // pred_check
        %p284 = pneg %p106
      $region22: #{combined_model_forward.1} parent=11 // pred_check_branch
        %286 = sbr.rel (%p284) target = $region24
      $region23: #{combined_model_forward.1} parent=11 // pred_region
        _
      $region24: #{combined_model_forward.1} parent=11 // pred_fallthru
        _
      // Predicated region
      $region25: #{combined_model_forward.1} parent=11 // pred_check
        %p287 = pneg %p127
      $region26: #{combined_model_forward.1} parent=11 // pred_check_branch
        %289 = sbr.rel (%p287) target = $region28
      $region27: #{combined_model_forward.1} parent=11 // pred_region
        _
      $region28: #{combined_model_forward.1} parent=11 // pred_fallthru
        _
      // Predicated region
      $region29: #{combined_model_forward.1} parent=11 // pred_check
        %p290 = pneg %p148
      $region30: #{combined_model_forward.1} parent=11 // pred_check_branch
        %292 = sbr.rel (%p290) target = $region32
      $region31: #{combined_model_forward.1} parent=11 // pred_region
        _
      $region32: #{combined_model_forward.1} parent=11 // pred_fallthru
        _
      // Predicated region
      $region33: #{combined_model_forward.1} parent=11 // pred_check
        %p293 = pneg %p169
      $region34: #{combined_model_forward.1} parent=11 // pred_check_branch
        %295 = sbr.rel (%p293) target = $region36
      $region35: #{combined_model_forward.1} parent=11 // pred_region
        _
      $region36: #{combined_model_forward.1} parent=11 // pred_fallthru
        _
      // Predicated region
      $region37: #{combined_model_forward.1} parent=11 // pred_check
        %p296 = pneg %p190
      $region38: #{combined_model_forward.1} parent=11 // pred_check_branch
        %298 = sbr.rel (%p296) target = $region40
      $region39: #{combined_model_forward.1} parent=11 // pred_region
        _
      $region40: #{combined_model_forward.1} parent=11 // pred_fallthru
        _
      // Predicated region
      $region41: #{combined_model_forward.1} parent=11 // pred_check
        %p299 = pneg %p211
      $region42: #{combined_model_forward.1} parent=11 // pred_check_branch
        %301 = sbr.rel (%p299) target = $region44
      $region43: #{combined_model_forward.1} parent=11 // pred_region
        _
      $region44: #{combined_model_forward.1} parent=11 // pred_fallthru
        _
    $region12: #{combined_model_forward.1} parent=5 // pred_fallthru
      _
    %p302 = scmp.lt.s32.totalorder %s17, 2
    // Predicated region
    $region45: #{combined_model_forward.1} parent=5 // pred_check
      %p303 = pneg %p302
    $region46: #{combined_model_forward.1} parent=5 // pred_check_branch
      %305 = sbr.rel (%p303) target = $region48
    $region47: #{combined_model_forward.1} parent=5 // pred_region
      // Predicated region
      $region49: #{combined_model_forward.1} parent=47 // pred_check
        %p306 = pneg %p37
      $region50: #{combined_model_forward.1} parent=47 // pred_check_branch
        %308 = sbr.rel (%p306) target = $region52
      $region51: #{combined_model_forward.1} parent=47 // pred_region
        %p309 = scmp.lt.s32.totalorder %s17, 1
        %s310 = scalar_select %p309, %s17, 1
        %s311 = smul.addr %s310, 3
        %s312 = smul.addr %s311, 4
        %s313 = scalar_lea.vmem %s0, %s312
      $region52: #{combined_model_forward.1} parent=47 // pred_fallthru
        _
    $region48: #{combined_model_forward.1} parent=5 // pred_fallthru
      _
    %p314 = scmp.le.s32.totalorder 1, %s17
    %p315 = scmp.lt.s32.totalorder %s17, 3
    %p316 = pnand %p314, %p315
    %p317 = pneg %p316
    // Predicated region
    $region53: #{combined_model_forward.1} parent=5 // pred_check
      _
    $region54: #{combined_model_forward.1} parent=5 // pred_check_branch
      %319 = sbr.rel (%p316) target = $region56
    $region55: #{combined_model_forward.1} parent=5 // pred_region
      %s320 = ssub.s32 %s17, 1
      %p321 = scmp.lt.s32.totalorder %s22, 1
      %s322 = scalar_select %p321, %s22, 1
      %s323 = smul.addr %s322, 3
      %s324 = smul.addr %s323, 4
      %s325 = scalar_lea.vmem %s0, %s324
      %p326 = pneg %p43
      %p327 = pneg %p40
      %p328 = pneg %p64
      %p329 = pneg %p61
      %p330 = pneg %p85
      %p331 = pneg %p82
      %p332 = pneg %p106
      %p333 = pneg %p103
      %p334 = pneg %p127
      %p335 = pneg %p124
      %p336 = pneg %p148
      %p337 = pneg %p145
      %p338 = pneg %p169
      %p339 = pneg %p166
      %p340 = pneg %p190
      %p341 = pneg %p187
      %p342 = pneg %p211
      %p343 = pneg %p208
      %p344 = pneg %p237
      %p345 = pneg %p234
      %p346 = scmp.lt.s32.totalorder %s22, 1
      %s347 = scalar_select %p346, %s22, 1
      %s348 = smul.addr %s347, 3
      %s349 = smul.addr %s348, 2
      %s350 = scalar_lea.vmem %s9, %s349
      %p351 = pneg %p263
      %p352 = pneg %p260
      %p353 = scmp.lt.s32.totalorder %s22, 1
      %s354 = scalar_select %p353, %s22, 1
      %s355 = smul.addr %s354, 4
      %s356 = scalar_lea.vmem %s10, %s355
      %p357 = scmp.lt.s32.totalorder %s22, 1
      %s358 = scalar_select %p357, %s22, 1
      %s359 = smul.addr %s358, 3
      %s360 = smul.addr %s359, 4
      %s361 = scalar_lea.vmem %s0, %s360
      %p362 = scmp.lt.s32.totalorder %s22, 1
      %s363 = scalar_select %p362, %s22, 1
      %s364 = smul.addr %s363, 3
      %s365 = smul.addr %s364, 2
      %s366 = scalar_lea.vmem %s9, %s365
      %p367 = scmp.lt.s32.totalorder %s22, 1
      %s368 = scalar_select %p367, %s22, 1
      %s369 = smul.addr %s368, 4
      %s370 = scalar_lea.vmem %s10, %s369
      %v371 = vld [vmem:[%s1] sm:$0x7]
      %v372 = vld [vmem:[%s2] sm:$0x3]
      %v373 = vld [vmem:[%s4] sm:$0xff]
      %v374 = vld [vmem:[%s5] sm:$0xff]
      %v375 = vld [vmem:[%s3] sm:$0x3]
      %v376 = vld [vmem:[%s6] sm:$0xff]
      %v377 = vld [vmem:[%s7] sm:$0x7]
      %v378 = vld [vmem:[%s8] sm:$0x7]
      %v379 = vld [vmem:[%s361] sm:$0xff]
      %v380 = vld [vmem:[%s361 + $0x8] sm:$0xf]
      %383 = vst [vmem:[#allocation1] ss:$2 sm:$0xff] %v379
      %s384 = scalar_lea.vmem [#allocation1], 16
      %385 = vst [vmem:[%s384] ss:$2 sm:$0xff] %v380
      %v386 = vld.sshfl [vmem:[#allocation1] sm:$0xff pattern:$0x75316420]
      %v387 = vld.sshfl [vmem:[#allocation1 + $0x8] sm:$0xff pattern:$0x75316420]
      %v388 = vld.sshfl [vmem:[#allocation1 + $0x10] sm:$0xff pattern:$0x75316420]
      %392 = vst [vmem:[#allocation2] sm:$0xf] %v386
      %393 = vst [vmem:[#allocation2 + $0x8] sm:$0xf] %v387
      %394 = vst [vmem:[#allocation2 + $0x10] sm:$0xf] %v388
      %395 = vst [vmem:[#allocation1] ss:$2 sm:$0xff] %v379
      %s396 = scalar_lea.vmem [#allocation1], 16
      %397 = vst [vmem:[%s396] ss:$2 sm:$0xff] %v380
      %v398 = vld.sshfl [vmem:[#allocation1] sm:$0xff pattern:$0x75316420]
      %v399 = vld.sshfl [vmem:[#allocation1 + $0x8] sm:$0xff pattern:$0x75316420]
      %v400 = vld.sshfl [vmem:[#allocation1 + $0x10] sm:$0xff pattern:$0x75316420]
      %404 = vrot.lane.b32.xlu0 %v398, 127
      %v405 = vpop.permute.xlu0 %404
      %406 = vrot.lane.b32.xlu0 %v399, 127
      %v407 = vpop.permute.xlu0 %406
      %408 = vrot.lane.b32.xlu0 %v400, 127
      %v409 = vpop.permute.xlu0 %408
      %v410 = vlaneseq
      %v411 = vand.u32 %v410, 127
      %vm412 = vcmp.lt.s32.totalorder %v411, 127
      %v413 = vsel %vm412, %v407, %v409
      %v414 = vsel %vm412, %v405, %v407
      %v415 = vsel %vm412, %v409, %v405
      %v419 = vrot.slane %v414, 4
      %v420 = vrot.slane %v413, 4
      %v421 = vrot.slane %v415, 4
      %425 = vst [vmem:[#allocation2] sm:$0xf0] %v419
      %426 = vst [vmem:[#allocation2 + $0x8] sm:$0xf0] %v420
      %427 = vst [vmem:[#allocation2 + $0x10] sm:$0xf0] %v421
      %428 = vst [vmem:[#allocation1] ss:$2 sm:$0xff] %v379
      %s429 = scalar_lea.vmem [#allocation1], 16
      %430 = vst [vmem:[%s429] ss:$2 sm:$0xff] %v380
      %v431 = vld.sshfl [vmem:[#allocation1] sm:$0xff pattern:$0x75316420]
      %v432 = vld.sshfl [vmem:[#allocation1 + $0x8] sm:$0xff pattern:$0x75316420]
      %v433 = vld.sshfl [vmem:[#allocation1 + $0x10] sm:$0xff pattern:$0x75316420]
      %437 = vrot.lane.b32.xlu0 %v431, 126
      %v438 = vpop.permute.xlu0 %437
      %439 = vrot.lane.b32.xlu0 %v432, 126
      %v440 = vpop.permute.xlu0 %439
      %441 = vrot.lane.b32.xlu0 %v433, 126
      %v442 = vpop.permute.xlu0 %441
      %vm443 = vcmp.lt.s32.totalorder %v411, 126
      %v444 = vsel %vm443, %v440, %v442
      %v445 = vsel %vm443, %v438, %v440
      %v446 = vsel %vm443, %v442, %v438
      %447 = vst [vmem:[#allocation2 + $0x18] sm:$0xf] %v445
      %448 = vst [vmem:[#allocation2 + $0x20] sm:$0xf] %v444
      %449 = vst [vmem:[#allocation2 + $0x28] sm:$0xf] %v446
      %450 = vst [vmem:[#allocation1] ss:$2 sm:$0xff] %v379
      %s451 = scalar_lea.vmem [#allocation1], 16
      %452 = vst [vmem:[%s451] ss:$2 sm:$0xff] %v380
      %v453 = vld.sshfl [vmem:[#allocation1] sm:$0xff pattern:$0x75316420]
      %v454 = vld.sshfl [vmem:[#allocation1 + $0x8] sm:$0xff pattern:$0x75316420]
      %v455 = vld.sshfl [vmem:[#allocation1 + $0x10] sm:$0xff pattern:$0x75316420]
      %459 = vrot.lane.b32.xlu0 %v453, 110
      %v460 = vpop.permute.xlu0 %459
      %461 = vrot.lane.b32.xlu0 %v454, 110
      %v462 = vpop.permute.xlu0 %461
      %463 = vrot.lane.b32.xlu0 %v455, 110
      %v464 = vpop.permute.xlu0 %463
      %vm465 = vcmp.lt.s32.totalorder %v411, 110
      %v466 = vsel %vm465, %v462, %v464
      %v467 = vsel %vm465, %v460, %v462
      %v468 = vsel %vm465, %v464, %v460
      %v472 = vrot.slane %v467, 4
      %v473 = vrot.slane %v466, 4
      %v474 = vrot.slane %v468, 4
      %478 = vst [vmem:[#allocation2 + $0x18] sm:$0xf0] %v472
      %479 = vst [vmem:[#allocation2 + $0x20] sm:$0xf0] %v473
      %480 = vst [vmem:[#allocation2 + $0x28] sm:$0xf0] %v474
      %481 = vst [vmem:[#allocation1] ss:$2 sm:$0xff] %v379
      %s482 = scalar_lea.vmem [#allocation1], 16
      %483 = vst [vmem:[%s482] ss:$2 sm:$0xff] %v380
      %v484 = vld.sshfl [vmem:[#allocation1] sm:$0xff pattern:$0x75316420]
      %v485 = vld.sshfl [vmem:[#allocation1 + $0x8] sm:$0xff pattern:$0x75316420]
      %v486 = vld.sshfl [vmem:[#allocation1 + $0x10] sm:$0xff pattern:$0x75316420]
      %490 = vrot.lane.b32.xlu0 %v484, 109
      %v491 = vpop.permute.xlu0 %490
      %492 = vrot.lane.b32.xlu0 %v485, 109
      %v493 = vpop.permute.xlu0 %492
      %494 = vrot.lane.b32.xlu0 %v486, 109
      %v495 = vpop.permute.xlu0 %494
      %vm496 = vcmp.lt.s32.totalorder %v411, 109
      %v497 = vsel %vm496, %v493, %v495
      %v498 = vsel %vm496, %v491, %v493
      %v499 = vsel %vm496, %v495, %v491
      %500 = vst [vmem:[#allocation2 + $0x30] sm:$0xf] %v498
      %501 = vst [vmem:[#allocation2 + $0x38] sm:$0xf] %v497
      %502 = vst [vmem:[#allocation2 + $0x40] sm:$0xf] %v499
      %503 = vst [vmem:[#allocation1] ss:$2 sm:$0xff] %v379
      %s504 = scalar_lea.vmem [#allocation1], 16
      %505 = vst [vmem:[%s504] ss:$2 sm:$0xff] %v380
      %v506 = vld.sshfl [vmem:[#allocation1] sm:$0xff pattern:$0x75316420]
      %v507 = vld.sshfl [vmem:[#allocation1 + $0x8] sm:$0xff pattern:$0x75316420]
      %v508 = vld.sshfl [vmem:[#allocation1 + $0x10] sm:$0xff pattern:$0x75316420]
      %512 = vrot.lane.b32.xlu0 %v506, 108
      %v513 = vpop.permute.xlu0 %512
      %514 = vrot.lane.b32.xlu0 %v507, 108
      %v515 = vpop.permute.xlu0 %514
      %516 = vrot.lane.b32.xlu0 %v508, 108
      %v517 = vpop.permute.xlu0 %516
      %vm518 = vcmp.lt.s32.totalorder %v411, 108
      %v519 = vsel %vm518, %v515, %v517
      %v520 = vsel %vm518, %v513, %v515
      %v521 = vsel %vm518, %v517, %v513
      %v525 = vrot.slane %v520, 4
      %v526 = vrot.slane %v519, 4
      %v527 = vrot.slane %v521, 4
      %531 = vst [vmem:[#allocation2 + $0x30] sm:$0xf0] %v525
      %532 = vst [vmem:[#allocation2 + $0x38] sm:$0xf0] %v526
      %533 = vst [vmem:[#allocation2 + $0x40] sm:$0xf0] %v527
      %534 = vst [vmem:[#allocation1] ss:$2 sm:$0xff] %v379
      %s535 = scalar_lea.vmem [#allocation1], 16
      %536 = vst [vmem:[%s535] ss:$2 sm:$0xff] %v380
      %v537 = vld.sshfl [vmem:[#allocation1] sm:$0xff pattern:$0x75316420]
      %v538 = vld.sshfl [vmem:[#allocation1 + $0x8] sm:$0xff pattern:$0x75316420]
      %v539 = vld.sshfl [vmem:[#allocation1 + $0x10] sm:$0xff pattern:$0x75316420]
      %543 = vrot.lane.b32.xlu0 %v537, 92
      %v544 = vpop.permute.xlu0 %543
      %545 = vrot.lane.b32.xlu0 %v538, 92
      %v546 = vpop.permute.xlu0 %545
      %547 = vrot.lane.b32.xlu0 %v539, 92
      %v548 = vpop.permute.xlu0 %547
      %vm549 = vcmp.lt.s32.totalorder %v411, 92
      %v550 = vsel %vm549, %v546, %v548
      %v551 = vsel %vm549, %v544, %v546
      %v552 = vsel %vm549, %v548, %v544
      %553 = vst [vmem:[#allocation2 + $0x48] sm:$0xf] %v551
      %554 = vst [vmem:[#allocation2 + $0x50] sm:$0xf] %v550
      %555 = vst [vmem:[#allocation2 + $0x58] sm:$0xf] %v552
      %556 = vst [vmem:[#allocation1] ss:$2 sm:$0xff] %v379
      %s557 = scalar_lea.vmem [#allocation1], 16
      %558 = vst [vmem:[%s557] ss:$2 sm:$0xff] %v380
      %v559 = vld.sshfl [vmem:[#allocation1] sm:$0xff pattern:$0x75316420]
      %v560 = vld.sshfl [vmem:[#allocation1 + $0x8] sm:$0xff pattern:$0x75316420]
      %v561 = vld.sshfl [vmem:[#allocation1 + $0x10] sm:$0xff pattern:$0x75316420]
      %565 = vrot.lane.b32.xlu0 %v559, 91
      %v566 = vpop.permute.xlu0 %565
      %567 = vrot.lane.b32.xlu0 %v560, 91
      %v568 = vpop.permute.xlu0 %567
      %569 = vrot.lane.b32.xlu0 %v561, 91
      %v570 = vpop.permute.xlu0 %569
      %vm571 = vcmp.lt.s32.totalorder %v411, 91
      %v572 = vsel %vm571, %v568, %v570
      %v573 = vsel %vm571, %v566, %v568
      %v574 = vsel %vm571, %v570, %v566
      %v578 = vrot.slane %v573, 4
      %v579 = vrot.slane %v572, 4
      %v580 = vrot.slane %v574, 4
      %584 = vst [vmem:[#allocation2 + $0x48] sm:$0xf0] %v578
      %585 = vst [vmem:[#allocation2 + $0x50] sm:$0xf0] %v579
      %586 = vst [vmem:[#allocation2 + $0x58] sm:$0xf0] %v580
      %587 = vst [vmem:[#allocation1] ss:$2 sm:$0xff] %v379
      %s588 = scalar_lea.vmem [#allocation1], 16
      %589 = vst [vmem:[%s588] ss:$2 sm:$0xff] %v380
      %v590 = vld.sshfl [vmem:[#allocation1] sm:$0xff pattern:$0x75316420]
      %v591 = vld.sshfl [vmem:[#allocation1 + $0x8] sm:$0xff pattern:$0x75316420]
      %v592 = vld.sshfl [vmem:[#allocation1 + $0x10] sm:$0xff pattern:$0x75316420]
      %596 = vrot.lane.b32.xlu0 %v590, 90
      %v597 = vpop.permute.xlu0 %596
      %598 = vrot.lane.b32.xlu0 %v591, 90
      %v599 = vpop.permute.xlu0 %598
      %600 = vrot.lane.b32.xlu0 %v592, 90
      %v601 = vpop.permute.xlu0 %600
      %vm602 = vcmp.lt.s32.totalorder %v411, 90
      %v603 = vsel %vm602, %v599, %v601
      %v604 = vsel %vm602, %v597, %v599
      %v605 = vsel %vm602, %v601, %v597
      %606 = vst [vmem:[#allocation2 + $0x60] sm:$0xf] %v604
      %607 = vst [vmem:[#allocation2 + $0x68] sm:$0xf] %v603
      %608 = vst [vmem:[#allocation2 + $0x70] sm:$0xf] %v605
      %v609 = vld [vmem:[#allocation2] sm:$0xff]
      %v610 = vld [vmem:[#allocation2 + $0x8] sm:$0xff]
      %v611 = vld [vmem:[#allocation2 + $0x10] sm:$0xff]
      %v612 = vld [vmem:[#allocation2 + $0x18] sm:$0xff]
      %v613 = vld [vmem:[#allocation2 + $0x20] sm:$0xff]
      %v614 = vld [vmem:[#allocation2 + $0x28] sm:$0xff]
      %v615 = vld [vmem:[#allocation2 + $0x30] sm:$0xff]
      %v616 = vld [vmem:[#allocation2 + $0x38] sm:$0xff]
      %v617 = vld [vmem:[#allocation2 + $0x40] sm:$0xff]
      %v618 = vld [vmem:[#allocation2 + $0x48] sm:$0xff]
      %v619 = vld [vmem:[#allocation2 + $0x50] sm:$0xff]
      %v620 = vld [vmem:[#allocation2 + $0x58] sm:$0xff]
      %v621 = vld [vmem:[#allocation2 + $0x60] sm:$0xf]
      %v622 = vld [vmem:[#allocation2 + $0x68] sm:$0xf]
      %v623 = vld [vmem:[#allocation2 + $0x70] sm:$0xf]
      %625 = vset.pattern.permute.xlu0 0
      %626 = vperm.xlu0 %625, %v375
      %v627 = vpop.permute.xlu0 %626
      %vm629 = vcmask 293888
      %v631 = vsel %vm629, %v372, 0
      %vm633 = vcmask 1043456
      %v635 = vsel %vm633, %v621, 0
      %v638 = vsel %vm633, %v622, 0
      %v641 = vsel %vm633, %v623, 0
      %643 = vmatpush.msra.mxu0 0.0
      %644 = vmatpush.msra.mxu0 0.0
      %645 = vmatpush.msra.mxu0 0.0
      %646 = vmatpush.msra.mxu0 0.0
      %647 = vmatpush.msra.mxu0 0.0
      %648 = vmatpush.msra.mxu0 0.0
      %649 = vmatpush.msra.mxu0 0.0
      %650 = vmatpush.msra.mxu0 0.0
      %651 = vmatpush.msra.mxu0 0.0
      %652 = vmatpush.msra.mxu0 0.0
      %653 = vmatpush.msra.mxu0 0.0
      %654 = vmatpush.msra.mxu0 %v635
      %655 = vmatpush.msra.mxu0 %v618
      %656 = vmatpush.msra.mxu0 %v615
      %657 = vmatpush.msra.mxu0 %v612
      %658 = vmatpush.msra.mxu0 %v609
      %659 = vmatmul.f32.gmra.mxu0 %v631
      %v660 = vpop.f32.mrf.mxu0
      %v661 = vadd.f32 %v627, %v660
      %662 = vdwg.mxu0
      %663 = vmatpush.msra.mxu0 0.0
      %664 = vmatpush.msra.mxu0 0.0
      %665 = vmatpush.msra.mxu0 0.0
      %666 = vmatpush.msra.mxu0 0.0
      %667 = vmatpush.msra.mxu0 0.0
      %668 = vmatpush.msra.mxu0 0.0
      %669 = vmatpush.msra.mxu0 0.0
      %670 = vmatpush.msra.mxu0 0.0
      %671 = vmatpush.msra.mxu0 0.0
      %672 = vmatpush.msra.mxu0 0.0
      %673 = vmatpush.msra.mxu0 0.0
      %674 = vmatpush.msra.mxu0 %v638
      %675 = vmatpush.msra.mxu0 %v619
      %676 = vmatpush.msra.mxu0 %v616
      %677 = vmatpush.msra.mxu0 %v613
      %678 = vmatpush.msra.mxu0 %v610
      %679 = vmatmul.f32.gmra.mxu0 %v631
      %v680 = vpop.f32.mrf.mxu0
      %v681 = vadd.f32 %v627, %v680
      %682 = vdwg.mxu0
      %683 = vmatpush.msra.mxu0 0.0
      %684 = vmatpush.msra.mxu0 0.0
      %685 = vmatpush.msra.mxu0 0.0
      %686 = vmatpush.msra.mxu0 0.0
      %687 = vmatpush.msra.mxu0 0.0
      %688 = vmatpush.msra.mxu0 0.0
      %689 = vmatpush.msra.mxu0 0.0
      %690 = vmatpush.msra.mxu0 0.0
      %691 = vmatpush.msra.mxu0 0.0
      %692 = vmatpush.msra.mxu0 0.0
      %693 = vmatpush.msra.mxu0 0.0
      %694 = vmatpush.msra.mxu0 %v641
      %695 = vmatpush.msra.mxu0 %v620
      %696 = vmatpush.msra.mxu0 %v617
      %697 = vmatpush.msra.mxu0 %v614
      %698 = vmatpush.msra.mxu0 %v611
      %699 = vmatmul.f32.gmra.mxu0 %v631
      %v700 = vpop.f32.mrf.mxu0
      %v701 = vadd.f32 %v627, %v700
      %702 = vdwg.mxu0
      %v706 = vrot.slane %v681, 6
      %v707 = vrot.slane %v701, 4
      %vm708 = vcmask 1041408
      %v709 = vsel %vm708, %v661, %v706
      %v710 = vsel %vm633, %v709, %v707
      %712 = vst [vmem:[%s366] sm:$0x3f] %v710
      %v714 = vperm.slane %v371, 0
      %v715 = vperm.slane %v371, 1
      %v716 = vperm.slane %v371, 2
      %v720 = vmul.f32 %v661, %v714
      %v721 = vmul.f32 %v681, %v715
      %v722 = vmul.f32 %v701, %v716
      %723 = vrot.lane.b32.xlu0 %v720, 19
      %v724 = vpop.permute.xlu0 %723
      %725 = vrot.lane.b32.xlu0 %v721, 19
      %v726 = vpop.permute.xlu0 %725
      %727 = vrot.lane.b32.xlu0 %v722, 19
      %v728 = vpop.permute.xlu0 %727
      %vm729 = vcmp.lt.s32.totalorder %v411, 19
      %v730 = vsel %vm729, %v726, %v728
      %v731 = vsel %vm729, %v724, %v726
      %v732 = vsel %vm729, %v728, %v724
      %733 = vst [vmem:[#allocation3] sm:$0x3] %v732
      %734 = vst [vmem:[#allocation3 + $0x8] sm:$0x3] %v731
      %735 = vst [vmem:[#allocation3 + $0x10] sm:$0x3] %v730
      %736 = vrot.lane.b32.xlu0 %v732, 127
      %v737 = vpop.permute.xlu0 %736
      %738 = vrot.lane.b32.xlu0 %v731, 127
      %v739 = vpop.permute.xlu0 %738
      %740 = vrot.lane.b32.xlu0 %v730, 127
      %v741 = vpop.permute.xlu0 %740
      %v742 = vsel %vm412, %v739, %v741
      %v743 = vsel %vm412, %v737, %v739
      %v744 = vsel %vm412, %v741, %v737
      %v748 = vrot.slane %v743, 6
      %v749 = vrot.slane %v742, 6
      %v750 = vrot.slane %v744, 6
      %754 = vst [vmem:[#allocation3] sm:$0xc] %v748
      %755 = vst [vmem:[#allocation3 + $0x8] sm:$0xc] %v749
      %756 = vst [vmem:[#allocation3 + $0x10] sm:$0xc] %v750
      %757 = vrot.lane.b32.xlu0 %v732, 126
      %v758 = vpop.permute.xlu0 %757
      %759 = vrot.lane.b32.xlu0 %v731, 126
      %v760 = vpop.permute.xlu0 %759
      %761 = vrot.lane.b32.xlu0 %v730, 126
      %v762 = vpop.permute.xlu0 %761
      %v763 = vsel %vm443, %v760, %v762
      %v764 = vsel %vm443, %v758, %v760
      %v765 = vsel %vm443, %v762, %v758
      %v769 = vrot.slane %v764, 4
      %v770 = vrot.slane %v763, 4
      %v771 = vrot.slane %v765, 4
      %775 = vst [vmem:[#allocation3] sm:$0x30] %v769
      %776 = vst [vmem:[#allocation3 + $0x8] sm:$0x30] %v770
      %777 = vst [vmem:[#allocation3 + $0x10] sm:$0x30] %v771
      %778 = vrot.lane.b32.xlu0 %v732, 110
      %v779 = vpop.permute.xlu0 %778
      %780 = vrot.lane.b32.xlu0 %v731, 110
      %v781 = vpop.permute.xlu0 %780
      %782 = vrot.lane.b32.xlu0 %v730, 110
      %v783 = vpop.permute.xlu0 %782
      %v784 = vsel %vm465, %v781, %v783
      %v785 = vsel %vm465, %v779, %v781
      %v786 = vsel %vm465, %v783, %v779
      %v790 = vrot.slane %v785, 2
      %v791 = vrot.slane %v784, 2
      %v792 = vrot.slane %v786, 2
      %796 = vst [vmem:[#allocation3] sm:$0xc0] %v790
      %797 = vst [vmem:[#allocation3 + $0x8] sm:$0xc0] %v791
      %798 = vst [vmem:[#allocation3 + $0x10] sm:$0xc0] %v792
      %799 = vrot.lane.b32.xlu0 %v732, 109
      %v800 = vpop.permute.xlu0 %799
      %801 = vrot.lane.b32.xlu0 %v731, 109
      %v802 = vpop.permute.xlu0 %801
      %803 = vrot.lane.b32.xlu0 %v730, 109
      %v804 = vpop.permute.xlu0 %803
      %v805 = vsel %vm496, %v802, %v804
      %v806 = vsel %vm496, %v800, %v802
      %v807 = vsel %vm496, %v804, %v800
      %808 = vst [vmem:[#allocation3 + $0x18] sm:$0x3] %v806
      %809 = vst [vmem:[#allocation3 + $0x20] sm:$0x3] %v805
      %810 = vst [vmem:[#allocation3 + $0x28] sm:$0x3] %v807
      %811 = vrot.lane.b32.xlu0 %v732, 108
      %v812 = vpop.permute.xlu0 %811
      %813 = vrot.lane.b32.xlu0 %v731, 108
      %v814 = vpop.permute.xlu0 %813
      %815 = vrot.lane.b32.xlu0 %v730, 108
      %v816 = vpop.permute.xlu0 %815
      %v817 = vsel %vm518, %v814, %v816
      %v818 = vsel %vm518, %v812, %v814
      %v819 = vsel %vm518, %v816, %v812
      %v823 = vrot.slane %v818, 6
      %v824 = vrot.slane %v817, 6
      %v825 = vrot.slane %v819, 6
      %829 = vst [vmem:[#allocation3 + $0x18] sm:$0xc] %v823
      %830 = vst [vmem:[#allocation3 + $0x20] sm:$0xc] %v824
      %831 = vst [vmem:[#allocation3 + $0x28] sm:$0xc] %v825
      %832 = vrot.lane.b32.xlu0 %v732, 92
      %v833 = vpop.permute.xlu0 %832
      %834 = vrot.lane.b32.xlu0 %v731, 92
      %v835 = vpop.permute.xlu0 %834
      %836 = vrot.lane.b32.xlu0 %v730, 92
      %v837 = vpop.permute.xlu0 %836
      %v838 = vsel %vm549, %v835, %v837
      %v839 = vsel %vm549, %v833, %v835
      %v840 = vsel %vm549, %v837, %v833
      %v844 = vrot.slane %v839, 4
      %v845 = vrot.slane %v838, 4
      %v846 = vrot.slane %v840, 4
      %850 = vst [vmem:[#allocation3 + $0x18] sm:$0x30] %v844
      %851 = vst [vmem:[#allocation3 + $0x20] sm:$0x30] %v845
      %852 = vst [vmem:[#allocation3 + $0x28] sm:$0x30] %v846
      %853 = vrot.lane.b32.xlu0 %v732, 91
      %v854 = vpop.permute.xlu0 %853
      %855 = vrot.lane.b32.xlu0 %v731, 91
      %v856 = vpop.permute.xlu0 %855
      %857 = vrot.lane.b32.xlu0 %v730, 91
      %v858 = vpop.permute.xlu0 %857
      %v859 = vsel %vm571, %v856, %v858
      %v860 = vsel %vm571, %v854, %v856
      %v861 = vsel %vm571, %v858, %v854
      %v865 = vrot.slane %v860, 2
      %v866 = vrot.slane %v859, 2
      %v867 = vrot.slane %v861, 2
      %871 = vst [vmem:[#allocation3 + $0x18] sm:$0xc0] %v865
      %872 = vst [vmem:[#allocation3 + $0x20] sm:$0xc0] %v866
      %873 = vst [vmem:[#allocation3 + $0x28] sm:$0xc0] %v867
      %874 = vrot.lane.b32.xlu0 %v732, 90
      %v875 = vpop.permute.xlu0 %874
      %876 = vrot.lane.b32.xlu0 %v731, 90
      %v877 = vpop.permute.xlu0 %876
      %878 = vrot.lane.b32.xlu0 %v730, 90
      %v879 = vpop.permute.xlu0 %878
      %v880 = vsel %vm602, %v877, %v879
      %v881 = vsel %vm602, %v875, %v877
      %v882 = vsel %vm602, %v879, %v875
      %883 = vst [vmem:[#allocation3 + $0x30] sm:$0x3] %v881
      %884 = vst [vmem:[#allocation3 + $0x38] sm:$0x3] %v880
      %885 = vst [vmem:[#allocation3 + $0x40] sm:$0x3] %v882
      %v886 = vld [vmem:[#allocation3] sm:$0xff]
      %v887 = vld [vmem:[#allocation3 + $0x8] sm:$0xff]
      %v888 = vld [vmem:[#allocation3 + $0x10] sm:$0xff]
      %v889 = vld [vmem:[#allocation3 + $0x18] sm:$0xff]
      %v890 = vld [vmem:[#allocation3 + $0x20] sm:$0xff]
      %v891 = vld [vmem:[#allocation3 + $0x28] sm:$0xff]
      %v892 = vld [vmem:[#allocation3 + $0x30] sm:$0x3]
      %v893 = vld [vmem:[#allocation3 + $0x38] sm:$0x3]
      %v894 = vld [vmem:[#allocation3 + $0x40] sm:$0x3]
      %vm895 = vcmask 146432
      %v897 = vsel %vm895, %v374, 0
      %v900 = vsel %vm708, %v892, 0
      %v903 = vsel %vm708, %v893, 0
      %v906 = vsel %vm708, %v894, 0
      %908 = vmatpush.msra.mxu0 0.0
      %909 = vmatpush.msra.mxu0 0.0
      %910 = vmatpush.msra.mxu0 0.0
      %911 = vmatpush.msra.mxu0 0.0
      %912 = vmatpush.msra.mxu0 0.0
      %913 = vmatpush.msra.mxu0 0.0
      %914 = vmatpush.msra.mxu0 0.0
      %915 = vmatpush.msra.mxu0 0.0
      %916 = vmatpush.msra.mxu0 0.0
      %917 = vmatpush.msra.mxu0 0.0
      %918 = vmatpush.msra.mxu0 0.0
      %919 = vmatpush.msra.mxu0 0.0
      %920 = vmatpush.msra.mxu0 0.0
      %921 = vmatpush.msra.mxu0 %v900
      %922 = vmatpush.msra.mxu0 %v889
      %923 = vmatpush.msra.mxu0 %v886
      %924 = vmatmul.f32.gmra.mxu0 %v897
      %v925 = vpop.f32.mrf.mxu0
      %v926 = vadd.f32 0.0, %v925
      %927 = vdwg.mxu0
      %928 = vmatpush.msra.mxu0 0.0
      %929 = vmatpush.msra.mxu0 0.0
      %930 = vmatpush.msra.mxu0 0.0
      %931 = vmatpush.msra.mxu0 0.0
      %932 = vmatpush.msra.mxu0 0.0
      %933 = vmatpush.msra.mxu0 0.0
      %934 = vmatpush.msra.mxu0 0.0
      %935 = vmatpush.msra.mxu0 0.0
      %936 = vmatpush.msra.mxu0 0.0
      %937 = vmatpush.msra.mxu0 0.0
      %938 = vmatpush.msra.mxu0 0.0
      %939 = vmatpush.msra.mxu0 0.0
      %940 = vmatpush.msra.mxu0 0.0
      %941 = vmatpush.msra.mxu0 %v903
      %942 = vmatpush.msra.mxu0 %v890
      %943 = vmatpush.msra.mxu0 %v887
      %944 = vmatmul.f32.gmra.mxu0 %v897
      %v945 = vpop.f32.mrf.mxu0
      %v946 = vadd.f32 0.0, %v945
      %947 = vdwg.mxu0
      %948 = vmatpush.msra.mxu0 0.0
      %949 = vmatpush.msra.mxu0 0.0
      %950 = vmatpush.msra.mxu0 0.0
      %951 = vmatpush.msra.mxu0 0.0
      %952 = vmatpush.msra.mxu0 0.0
      %953 = vmatpush.msra.mxu0 0.0
      %954 = vmatpush.msra.mxu0 0.0
      %955 = vmatpush.msra.mxu0 0.0
      %956 = vmatpush.msra.mxu0 0.0
      %957 = vmatpush.msra.mxu0 0.0
      %958 = vmatpush.msra.mxu0 0.0
      %959 = vmatpush.msra.mxu0 0.0
      %960 = vmatpush.msra.mxu0 0.0
      %961 = vmatpush.msra.mxu0 %v906
      %962 = vmatpush.msra.mxu0 %v891
      %963 = vmatpush.msra.mxu0 %v888
      %964 = vmatmul.f32.gmra.mxu0 %v897
      %v965 = vpop.f32.mrf.mxu0
      %v966 = vadd.f32 0.0, %v965
      %967 = vdwg.mxu0
      %v969 = vsel %vm629, %v373, 0
      %971 = vmatpush.msra.mxu0 0.0
      %972 = vmatpush.msra.mxu0 0.0
      %973 = vmatpush.msra.mxu0 0.0
      %974 = vmatpush.msra.mxu0 0.0
      %975 = vmatpush.msra.mxu0 0.0
      %976 = vmatpush.msra.mxu0 0.0
      %977 = vmatpush.msra.mxu0 0.0
      %978 = vmatpush.msra.mxu0 0.0
      %979 = vmatpush.msra.mxu0 0.0
      %980 = vmatpush.msra.mxu0 0.0
      %981 = vmatpush.msra.mxu0 0.0
      %982 = vmatpush.msra.mxu0 %v635
      %983 = vmatpush.msra.mxu0 %v618
      %984 = vmatpush.msra.mxu0 %v615
      %985 = vmatpush.msra.mxu0 %v612
      %986 = vmatpush.msra.mxu0 %v609
      %987 = vmatmul.f32.gmra.mxu0 %v969
      %v988 = vpop.f32.mrf.mxu0
      %v989 = vadd.f32 %v926, %v988
      %990 = vdwg.mxu0
      %991 = vmatpush.msra.mxu0 0.0
      %992 = vmatpush.msra.mxu0 0.0
      %993 = vmatpush.msra.mxu0 0.0
      %994 = vmatpush.msra.mxu0 0.0
      %995 = vmatpush.msra.mxu0 0.0
      %996 = vmatpush.msra.mxu0 0.0
      %997 = vmatpush.msra.mxu0 0.0
      %998 = vmatpush.msra.mxu0 0.0
      %999 = vmatpush.msra.mxu0 0.0
      %1000 = vmatpush.msra.mxu0 0.0
      %1001 = vmatpush.msra.mxu0 0.0
      %1002 = vmatpush.msra.mxu0 %v638
      %1003 = vmatpush.msra.mxu0 %v619
      %1004 = vmatpush.msra.mxu0 %v616
      %1005 = vmatpush.msra.mxu0 %v613
      %1006 = vmatpush.msra.mxu0 %v610
      %1007 = vmatmul.f32.gmra.mxu0 %v969
      %v1008 = vpop.f32.mrf.mxu0
      %v1009 = vadd.f32 %v946, %v1008
      %1010 = vdwg.mxu0
      %1011 = vmatpush.msra.mxu0 0.0
      %1012 = vmatpush.msra.mxu0 0.0
      %1013 = vmatpush.msra.mxu0 0.0
      %1014 = vmatpush.msra.mxu0 0.0
      %1015 = vmatpush.msra.mxu0 0.0
      %1016 = vmatpush.msra.mxu0 0.0
      %1017 = vmatpush.msra.mxu0 0.0
      %1018 = vmatpush.msra.mxu0 0.0
      %1019 = vmatpush.msra.mxu0 0.0
      %1020 = vmatpush.msra.mxu0 0.0
      %1021 = vmatpush.msra.mxu0 0.0
      %1022 = vmatpush.msra.mxu0 %v641
      %1023 = vmatpush.msra.mxu0 %v620
      %1024 = vmatpush.msra.mxu0 %v617
      %1025 = vmatpush.msra.mxu0 %v614
      %1026 = vmatpush.msra.mxu0 %v611
      %1027 = vmatmul.f32.gmra.mxu0 %v969
      %v1028 = vpop.f32.mrf.mxu0
      %v1029 = vadd.f32 %v966, %v1028
      %1030 = vdwg.mxu0
      %1032 = vset.pattern.permute.xlu0 0
      %1033 = vperm.xlu0 %1032, %v376
      %v1034 = vpop.permute.xlu0 %1033
      %v1036 = vadd.f32 %v989, %v1034
      %v1037 = vadd.f32 %v1009, %v1034
      %v1038 = vadd.f32 %v1029, %v1034
      %v1039 = vmax.f32 %v1036, 0.0
      %v1040 = vmax.f32 %v1037, 0.0
      %v1041 = vmax.f32 %v1038, 0.0
      %v1042 = vmul.f32 %v1039, %v714
      %v1043 = vmul.f32 %v1040, %v715
      %v1044 = vmul.f32 %v1041, %v716
      %v1045 = vadd.f32 %v1042, %v1043
      %v1046 = vadd.f32 %v1045, %v1044
      %1047 = vadd.xlane.f32.xlu0 %v1046
      %v1048 = vpop.xlane.xlu0 %1047
      %v1049 = vmul.f32 %v1048, 0.00390625
      %vm1050 = vcmask 64512
      %v1052 = vsel %vm1050, %v377, 0
      %1054 = vmatpush.msra.mxu0 0.0
      %1055 = vmatpush.msra.mxu0 0.0
      %1056 = vmatpush.msra.mxu0 0.0
      %1057 = vmatpush.msra.mxu0 0.0
      %1058 = vmatpush.msra.mxu0 0.0
      %1059 = vmatpush.msra.mxu0 0.0
      %1060 = vmatpush.msra.mxu0 0.0
      %1061 = vmatpush.msra.mxu0 0.0
      %1062 = vmatpush.msra.mxu0 0.0
      %1063 = vmatpush.msra.mxu0 0.0
      %1064 = vmatpush.msra.mxu0 0.0
      %1065 = vmatpush.msra.mxu0 0.0
      %1066 = vmatpush.msra.mxu0 0.0
      %1067 = vmatpush.msra.mxu0 0.0
      %1068 = vmatpush.msra.mxu0 0.0
      %1069 = vmatpush.msra.mxu0 %v1049
      %1070 = vmatmul.f32.gmra.mxu0 %v1052
      %v1071 = vpop.f32.mrf.mxu0
      %v1072 = vadd.f32 %v378, %v1071
      %1073 = vdwg.mxu0
      %vm1074 = vcmask 2048
      %1075 = vst.msk [vmem:[%s370] sm:$0x7] %vm1074, %v1072
      %p1076 = scmp.lt.s32.totalorder %s22, 1
      %s1077 = scalar_select %p1076, %s22, 1
      %s1078 = smul.addr %s1077, 3
      %s1079 = smul.addr %s1078, 2
      %s1080 = scalar_lea.vmem %s9, %s1079
      %p1081 = scmp.lt.s32.totalorder %s22, 1
      %s1082 = scalar_select %p1081, %s22, 1
      %s1083 = smul.addr %s1082, 4
      %s1084 = scalar_lea.vmem %s10, %s1083
      // Predicated region
      $region57: #{combined_model_forward.1} parent=55 // pred_check
        %p1085 = pneg %p234
      $region58: #{combined_model_forward.1} parent=55 // pred_check_branch
        %1087 = sbr.rel (%p1085) target = $region60
      $region59: #{combined_model_forward.1} parent=55 // pred_region
        _
      $region60: #{combined_model_forward.1} parent=55 // pred_fallthru
        _
      // Predicated region
      $region61: #{combined_model_forward.1} parent=55 // pred_check
        %p1088 = pneg %p260
      $region62: #{combined_model_forward.1} parent=55 // pred_check_branch
        %1090 = sbr.rel (%p1088) target = $region64
      $region63: #{combined_model_forward.1} parent=55 // pred_region
        _
      $region64: #{combined_model_forward.1} parent=55 // pred_fallthru
        _
    $region56: #{combined_model_forward.1} parent=5 // pred_fallthru
      _
    %p1091 = scmp.le.s32.totalorder 2, %s17
    // Predicated region
    $region65: #{combined_model_forward.1} parent=5 // pred_check
      %p1092 = pneg %p1091
    $region66: #{combined_model_forward.1} parent=5 // pred_check_branch
      %1094 = sbr.rel (%p1092) target = $region68
    $region67: #{combined_model_forward.1} parent=5 // pred_region
      %s1095 = ssub.s32 %s17, 2
      // Predicated region
      $region69: #{combined_model_forward.1} parent=67 // pred_check
        %p1096 = pneg %p240
      $region70: #{combined_model_forward.1} parent=67 // pred_check_branch
        %1098 = sbr.rel (%p1096) target = $region72
      $region71: #{combined_model_forward.1} parent=67 // pred_region
        %p1099 = scmp.lt.s32.totalorder %s23, 1
        %s1100 = scalar_select %p1099, %s23, 1
        %s1101 = smul.addr %s1100, 3
        %s1102 = smul.addr %s1101, 2
        %s1103 = scalar_lea.vmem %s9, %s1102
      $region72: #{combined_model_forward.1} parent=67 // pred_fallthru
        _
      // Predicated region
      $region73: #{combined_model_forward.1} parent=67 // pred_check
        %p1104 = pneg %p266
      $region74: #{combined_model_forward.1} parent=67 // pred_check_branch
        %1106 = sbr.rel (%p1104) target = $region76
      $region75: #{combined_model_forward.1} parent=67 // pred_region
        %p1107 = scmp.lt.s32.totalorder %s23, 1
        %s1108 = scalar_select %p1107, %s23, 1
        %s1109 = smul.addr %s1108, 4
        %s1110 = scalar_lea.vmem %s10, %s1109
      $region76: #{combined_model_forward.1} parent=67 // pred_fallthru
        _
    $region68: #{combined_model_forward.1} parent=5 // pred_fallthru
      _
  $region6: #{combined_model_forward.1} parent=0 // loop_footer
    %s21 = sadd.s32 1, %s17
  $region7: #{combined_model_forward.1} parent=0 // loop_footer_branch
    %16 = sbr.rel target = $region3
  $region8: #{combined_model_forward.1} parent=0 // loop_exit
    _

</llo_original>
